<compile_context>
chip_gen: v7x
topology: tpu7x:2x2x1
jax: 0.10.0
libtpu: 0.0.40
codegen_flags: <defaults>
</compile_context>

<pallas_src>
import functools

import jax
import jax.numpy as jnp
from jax.experimental import pallas as pl
from jax.experimental.pallas import tpu as pltpu


def _cdiv(a, b):
    return -(-a // b)


def _round_up(a, b):
    return _cdiv(a, b) * b


def _device_tuning():
    """Return (n_cores, vmem_limit_bytes, tile_budget_bytes) for this TPU gen."""
    kind = ""
    try:
        kind = jax.devices()[0].device_kind.lower().replace(" ", "")
    except Exception:
        pass
    is_v7 = ("v7" in kind) or ("tpu7" in kind)
    if is_v7:
        # v7x: 2 TensorCores/chip, only 64 MiB VMEM per core.
        n_cores, vmem_limit, budget = 2, 48 << 20, 32 << 20
    else:
        # v5e / v6e (and unknown): 1 TensorCore, 128 MiB physical VMEM.
        n_cores, vmem_limit, budget = 1, 96 << 20, 64 << 20
    try:
        cap = int(pltpu.get_tpu_info().vmem_capacity_bytes)
        vmem_limit = min(vmem_limit, int(cap * 0.75))
        budget = min(budget, int(cap * 0.5))
    except Exception:
        pass
    return n_cores, vmem_limit, budget


def _focal_loss_kernel(logits_ref, labels_ref, out_ref, acc_ref, *,
                       gamma: float, n_valid: int, tn: int):
    core = pl.program_id(0)        # megacore half (parallel axis)
    i = pl.program_id(1)           # row-tile index within this core's half
    n_inner = pl.num_programs(1)

    @pl.when(i == 0)
    def _init():
        acc_ref[...] = jnp.zeros_like(acc_ref)

    # Keep HBM traffic in storage dtype; compute in f32.
    logits = logits_ref[...].astype(jnp.float32)          # (TN, C)
    labels = labels_ref[...]                               # (TN, 1) int32
    tn_blk, c = logits.shape

    # Stable logsumexp over classes (lane axis).
    m = jnp.max(logits, axis=-1, keepdims=True)            # (TN, 1)
    lse = m + jnp.log(jnp.sum(jnp.exp(logits - m), axis=-1, keepdims=True))

    # Gather the logit at the label index via a one-hot mask (no dynamic gather
    # on the TPU vector path).
    class_ids = jax.lax.broadcasted_iota(jnp.int32, (tn_blk, c), 1)
    onehot = class_ids == labels
    label_logit = jnp.sum(jnp.where(onehot, logits, 0.0), axis=-1, keepdims=True)

    logp = lse - label_logit                                # per-row CE, (TN, 1)

    # Static gamma specialization (gamma is a compile-time partial).
    if gamma == 0.0:
        loss = logp                                         # plain CE
    else:
        p = jnp.exp(label_logit - lse)                      # softmax prob at label
        one_minus_p = jnp.maximum(1.0 - p, 0.0)             # clamp: avoid NaN in pow
        if float(gamma).is_integer() and 0 < gamma <= 8:
            focal = one_minus_p
            for _ in range(int(gamma) - 1):
                focal = focal * one_minus_p                 # VPU multiplies, no EUP pow
        else:
            focal = jnp.power(one_minus_p, gamma)
        loss = focal * logp

    # Mask rows past the valid range.  row0 is derived from the UNCLAMPED linear
    # block id, so both the unspecified tail of the last (partial) edge block and
    # any duplicated overflow step (clamped index_map) land at row_ids >= n_valid
    # and contribute exactly zero -- garbage data is never accumulated.
    lin = core * n_inner + i
    row0 = lin * tn
    row_ids = jax.lax.broadcasted_iota(jnp.int32, (tn_blk, 1), 0) + row0
    loss = jnp.where(row_ids < n_valid, loss, 0.0)

    # Accumulate this tile's sum into the resident scratch accumulator.
    acc_ref[...] += jnp.sum(loss, axis=0, keepdims=True)

    @pl.when(i == n_inner - 1)
    def _finalize():
        # Broadcast this core's partial sum into its lane-dense output block.
        out_ref[...] = jnp.zeros_like(out_ref) + acc_ref[...]


def focal_loss(logits: jax.Array, labels: jax.Array,
               gamma: float = 0.0, eps: float = 1e-07,
               tile_rows: int | None = None) -> jax.Array:
    """Pallas TPU focal loss. logits: (N, C) float, labels: (N,) int. Returns mean loss."""
    # NOTE: `eps` is unused in the reference forward pass; kept for signature parity.
    n, c = logits.shape
    itemsize = jnp.dtype(logits.dtype).itemsize

    n_cores, vmem_limit, budget = _device_tuning()

    # Per-row VMEM cost: 2 double-buffered storage-dtype tiles, ~3 (tn,C) f32
    # temporaries (cast / shifted logits / exp) plus the iota & one-hot compare,
    # plus the (tn,1) per-row chain and labels.
    if tile_rows is None:
        bytes_per_row = 2 * c * itemsize + 16 * c + 16
        tn = budget // bytes_per_row
        tn = min(tn, (8 << 20) // max(1, c * itemsize))   # <= ~8 MiB storage per tile
    else:
        tn = int(tile_rows)
    tn = min(tn, _round_up(n, 8))
    tn = max(8, (tn // 8) * 8)

    total_blocks = _cdiv(n, tn)
    blocks_per_core = _cdiv(total_blocks, n_cores)

    labels2d = labels.astype(jnp.int32).reshape(n, 1)

    def row_block(p, i):
        # Clamp so an overflow step on the second core re-reads the last real
        # block instead of indexing past the array; its rows are fully masked
        # inside the kernel.
        return (jnp.minimum(p * blocks_per_core + i, total_blocks - 1), 0)

    kernel = functools.partial(_focal_loss_kernel, gamma=float(gamma),
                               n_valid=n, tn=tn)

    partials = pl.pallas_call(
        kernel,
        out_shape=jax.ShapeDtypeStruct((n_cores * 8, 128), jnp.float32),
        grid_spec=pltpu.PrefetchScalarGridSpec(
            num_scalar_prefetch=0,
            grid=(n_cores, blocks_per_core),
            in_specs=[
                pl.BlockSpec((tn, c), row_block),
                pl.BlockSpec((tn, 1), row_block),
            ],
            out_specs=pl.BlockSpec((8, 128), lambda p, i: (p, 0)),
            scratch_shapes=[pltpu.VMEM((1, 1), jnp.float32)],
        ),
        compiler_params=pltpu.CompilerParams(
            dimension_semantics=("parallel", "arbitrary"),
            vmem_limit_bytes=int(vmem_limit)),
        cost_estimate=pl.CostEstimate(
            flops=6 * n * c,
            transcendentals=n * c,
            bytes_accessed=n * c * itemsize + n * 4 + n_cores * 8 * 128 * 4,
        ),
    )(logits, labels2d)

    total = jnp.sum(partials[0::8, 0])   # one partial per core
    return total / jnp.float32(n)


def _reference(logits, labels, gamma=0.0):
    logp = -jax.nn.log_softmax(logits.astype(jnp.float32), axis=-1)[
        jnp.arange(logits.shape[0]), labels]
    p = jnp.exp(-logp)
    return jnp.mean((1.0 - p) ** gamma * logp)


if __name__ == "__main__":
    key = jax.random.PRNGKey(0)
    k1, k2, k3, k4, k5, k6, k7, k8 = jax.random.split(key, 8)

    # Case 1: focal term active (gamma=2), aligned shapes.
    N1, C1 = 8, 32
    logits1 = jax.random.normal(k1, (N1, C1), dtype=jnp.float32)
    labels1 = jax.random.randint(k2, (N1,), 0, C1, dtype=jnp.int32)
    out1 = jax.block_until_ready(focal_loss(logits1, labels1, gamma=2.0))
    ref1 = _reference(logits1, labels1, gamma=2.0)
    assert jnp.allclose(out1, ref1, atol=1e-5, rtol=1e-5), (out1, ref1)

    # Case 2: gamma=0 (plain CE mean), ragged N exercising the unpadded
    # edge-block + row-mask path.
    N2, C2 = 13, 40
    logits2 = jax.random.normal(k3, (N2, C2), dtype=jnp.float32)
    labels2 = jax.random.randint(k4, (N2,), 0, C2, dtype=jnp.int32)
    out2 = jax.block_until_ready(focal_loss(logits2, labels2, gamma=0.0))
    ref2 = _reference(logits2, labels2, gamma=0.0)
    assert jnp.allclose(out2, ref2, atol=1e-5, rtol=1e-5), (out2, ref2)

    # Case 3: multi-block grid with an odd block count (exercises the clamped
    # index_map / duplicate-step masking and per-tile accumulation).
    N3, C3 = 90, 64
    logits3 = jax.random.normal(k5, (N3, C3), dtype=jnp.float32)
    labels3 = jax.random.randint(k6, (N3,), 0, C3, dtype=jnp.int32)
    out3 = jax.block_until_ready(focal_loss(logits3, labels3, gamma=2.0,
                                            tile_rows=32))
    ref3 = _reference(logits3, labels3, gamma=2.0)
    assert jnp.allclose(out3, ref3, atol=1e-5, rtol=1e-5), (out3, ref3)

    # Case 4: bf16 storage dtype path (DMA in storage dtype, f32 compute).
    N4, C4 = 24, 48
    logits4 = jax.random.normal(k7, (N4, C4), dtype=jnp.float32).astype(jnp.bfloat16)
    labels4 = jax.random.randint(k8, (N4,), 0, C4, dtype=jnp.int32)
    out4 = jax.block_until_ready(focal_loss(logits4, labels4, gamma=1.0))
    ref4 = _reference(logits4, labels4, gamma=1.0)
    assert jnp.allclose(out4, ref4, atol=1e-4, rtol=1e-4), (out4, ref4)

    print("KERNEL_OK")
</pallas_src>

<mosaic_0001>
module attributes {stable_mosaic.version = 11 : i64} {
  func.func @_focal_loss_kernel(%arg0: i32, %arg1: i32, %arg2: memref<8x32xf32, #tpu.memory_space<vmem>>, %arg3: memref<8x1xi32, #tpu.memory_space<vmem>>, %arg4: memref<8x128xf32, #tpu.memory_space<vmem>>, %arg5: memref<1x1xf32, #tpu.memory_space<vmem>>) attributes {dimension_semantics = [#tpu.dimension_semantics<parallel>, #tpu.dimension_semantics<arbitrary>], iteration_bounds = array<i64: 1, 1>, scalar_prefetch = 0 : i64, scratch_operands = 1 : i64, tpu.core_type = #tpu.core_type<tc>, window_params = [{transform_indices = @transform_0, window_bounds = array<i64: 8, 32>}, {transform_indices = @transform_1, window_bounds = array<i64: 8, 1>}, {transform_indices = @transform_2, window_bounds = array<i64: 8, 128>}]} {
    %c0_i32 = arith.constant 0 : i32
    %0 = arith.cmpi eq, %arg1, %c0_i32 : i32
    %1 = arith.extui %0 : i1 to i32
    %c0_i32_0 = arith.constant 0 : i32
    %2 = arith.cmpi ne, %1, %c0_i32_0 : i32
    scf.if %2 {
      %cst_18 = arith.constant 0.000000e+00 : f32
      %48 = vector.broadcast %cst_18 : f32 to vector<1x1xf32>
      %c0_19 = arith.constant 0 : index
      %c0_20 = arith.constant 0 : index
      %49 = vector.load %arg5[%c0_19, %c0_20] : memref<1x1xf32, #tpu.memory_space<vmem>>, vector<1x1xf32>
      tpu.vector_store %arg5[%c0_19, %c0_20], %48 {strides = array<i32>} : memref<1x1xf32, #tpu.memory_space<vmem>>, vector<1x1xf32>,
    } else {
    }
    %c0 = arith.constant 0 : index
    %c0_1 = arith.constant 0 : index
    %3 = vector.load %arg2[%c0, %c0_1] : memref<8x32xf32, #tpu.memory_space<vmem>>, vector<8x32xf32>
    %c0_2 = arith.constant 0 : index
    %c0_3 = arith.constant 0 : index
    %4 = vector.load %arg3[%c0_2, %c0_3] : memref<8x1xi32, #tpu.memory_space<vmem>>, vector<8x1xi32>
    %cst = arith.constant dense<0xFF800000> : vector<8xf32>
    %5 = vector.multi_reduction <maximumf>, %3, %cst [1] : vector<8x32xf32> to vector<8xf32>
    %6 = vector.shape_cast %5 : vector<8xf32> to vector<8x1xf32>
    %7 = vector.broadcast %6 : vector<8x1xf32> to vector<8x32xf32>
    %8 = arith.subf %3, %7 : vector<8x32xf32>
    %9 = math.exp %8 : vector<8x32xf32>
    %cst_4 = arith.constant dense<0.000000e+00> : vector<8xf32>
    %10 = vector.multi_reduction <add>, %9, %cst_4 [1] : vector<8x32xf32> to vector<8xf32>
    %11 = vector.shape_cast %10 : vector<8xf32> to vector<8x1xf32>
    %12 = math.log %11 : vector<8x1xf32>
    %13 = arith.addf %6, %12 : vector<8x1xf32>
    %14 = tpu.iota {dimensions = array<i32: 1>} : vector<8x32xi32>
    %15 = vector.broadcast %4 : vector<8x1xi32> to vector<8x32xi32>
    %16 = arith.cmpi eq, %14, %15 : vector<8x32xi32>
    %cst_5 = arith.constant 0.000000e+00 : f32
    %17 = vector.broadcast %cst_5 : f32 to vector<8x32xf32>
    %18 = arith.select %16, %3, %17 : vector<8x32xi1>, vector<8x32xf32>
    %cst_6 = arith.constant dense<0.000000e+00> : vector<8xf32>
    %19 = vector.multi_reduction <add>, %18, %cst_6 [1] : vector<8x32xf32> to vector<8xf32>
    %20 = vector.shape_cast %19 : vector<8xf32> to vector<8x1xf32>
    %21 = arith.subf %13, %20 : vector<8x1xf32>
    %22 = arith.subf %20, %13 : vector<8x1xf32>
    %23 = math.exp %22 : vector<8x1xf32>
    %cst_7 = arith.constant 1.000000e+00 : f32
    %24 = vector.broadcast %cst_7 : f32 to vector<8x1xf32>
    %25 = arith.subf %24, %23 : vector<8x1xf32>
    %cst_8 = arith.constant 0.000000e+00 : f32
    %26 = vector.broadcast %cst_8 : f32 to vector<8x1xf32>
    %27 = arith.maximumf %25, %26 : vector<8x1xf32>
    %28 = arith.mulf %27, %27 : vector<8x1xf32>
    %29 = arith.mulf %28, %21 : vector<8x1xf32>
    %c1_i32 = arith.constant 1 : i32
    %30 = arith.muli %arg0, %c1_i32 : i32
    %31 = arith.addi %30, %arg1 : i32
    %c8_i32 = arith.constant 8 : i32
    %32 = arith.muli %31, %c8_i32 : i32
    %33 = tpu.iota {dimensions = array<i32: 0>} : vector<8x1xi32>
    %34 = vector.broadcast %32 : i32 to vector<8x1xi32>
    %35 = arith.addi %33, %34 : vector<8x1xi32>
    %c8_i32_9 = arith.constant 8 : i32
    %36 = vector.broadcast %c8_i32_9 : i32 to vector<8x1xi32>
    %37 = arith.cmpi slt, %35, %36 : vector<8x1xi32>
    %cst_10 = arith.constant 0.000000e+00 : f32
    %38 = vector.broadcast %cst_10 : f32 to vector<8x1xf32>
    %39 = arith.select %37, %29, %38 : vector<8x1xi1>, vector<8x1xf32>
    %c0_11 = arith.constant 0 : index
    %c0_12 = arith.constant 0 : index
    %40 = vector.load %arg5[%c0_11, %c0_12] : memref<1x1xf32, #tpu.memory_space<vmem>>, vector<1x1xf32>
    %cst_13 = arith.constant dense<0.000000e+00> : vector<1xf32>
    %41 = vector.multi_reduction <add>, %39, %cst_13 [0] : vector<8x1xf32> to vector<1xf32>
    %42 = vector.shape_cast %41 : vector<1xf32> to vector<1x1xf32>
    %43 = arith.addf %40, %42 : vector<1x1xf32>
    %c0_14 = arith.constant 0 : index
    %c0_15 = arith.constant 0 : index
    %44 = vector.load %arg5[%c0_14, %c0_15] : memref<1x1xf32, #tpu.memory_space<vmem>>, vector<1x1xf32>
    tpu.vector_store %arg5[%c0_14, %c0_15], %43 {strides = array<i32>} : memref<1x1xf32, #tpu.memory_space<vmem>>, vector<1x1xf32>,
    %c0_i32_16 = arith.constant 0 : i32
    %45 = arith.cmpi eq, %arg1, %c0_i32_16 : i32
    %46 = arith.extui %45 : i1 to i32
    %c0_i32_17 = arith.constant 0 : i32
    %47 = arith.cmpi ne, %46, %c0_i32_17 : i32
    scf.if %47 {
      %cst_18 = arith.constant 0.000000e+00 : f32
      %48 = vector.broadcast %cst_18 : f32 to vector<8x128xf32>
      %c0_19 = arith.constant 0 : index
      %c0_20 = arith.constant 0 : index
      %49 = vector.load %arg5[%c0_19, %c0_20] : memref<1x1xf32, #tpu.memory_space<vmem>>, vector<1x1xf32>
      %50 = vector.broadcast %49 : vector<1x1xf32> to vector<8x128xf32>
      %51 = arith.addf %48, %50 : vector<8x128xf32>
      %c0_21 = arith.constant 0 : index
      %c0_22 = arith.constant 0 : index
      %52 = vector.load %arg4[%c0_21, %c0_22] : memref<8x128xf32, #tpu.memory_space<vmem>>, vector<8x128xf32>
      tpu.vector_store %arg4[%c0_21, %c0_22], %51 {strides = array<i32>} : memref<8x128xf32, #tpu.memory_space<vmem>>, vector<8x128xf32>,
    } else {
    }
    return
  }
  func.func @transform_0(%arg0: i32, %arg1: i32) -> (i32, i32) {
    %c1_i32 = arith.constant 1 : i32
    %0 = arith.muli %arg0, %c1_i32 : i32
    %1 = arith.addi %0, %arg1 : i32
    %c0_i32 = arith.constant 0 : i32
    %2 = arith.minsi %1, %c0_i32 : i32
    %c0_i32_0 = arith.constant 0 : i32
    %c0_i32_1 = arith.constant 0 : i32
    return %2, %c0_i32_0 : i32, i32
  }
  func.func @transform_1(%arg0: i32, %arg1: i32) -> (i32, i32) {
    %c1_i32 = arith.constant 1 : i32
    %0 = arith.muli %arg0, %c1_i32 : i32
    %1 = arith.addi %0, %arg1 : i32
    %c0_i32 = arith.constant 0 : i32
    %2 = arith.minsi %1, %c0_i32 : i32
    %c0_i32_0 = arith.constant 0 : i32
    %c0_i32_1 = arith.constant 0 : i32
    return %2, %c0_i32_0 : i32, i32
  }
  func.func @transform_2(%arg0: i32, %arg1: i32) -> (i32, i32) {
    %c0_i32 = arith.constant 0 : i32
    %c0_i32_0 = arith.constant 0 : i32
    return %arg0, %c0_i32 : i32, i32
  }
}

</mosaic_0001>

<llo_original>
// kernel: tpu_custom_call.1
$region0: #{tpu_custom_call.1}
  #allocation0 [shape = 'u32[]', space=smem, size = 0x4, offset = 0x4, fixed_abs, tag = 'smem constant byte address 0x4 - core index']
  #allocation1 [shape = 'u32[144,128]{1,0:T(1,128)}', space=vmem, size = 0x12000, scoped, tag = 'internal scratch']
  #allocation2 [shape = 'f32[1,1]{1,0:T(1,128)}', space=vmem, size = 0x200, scoped, tag = 'scratch operand']
  %s0 = inlined_call_operand.hbm [shape: f32[8,32], index: 0, kind: input, shape index: {}]
  %s1 = inlined_call_operand.hbm [shape: s32[8,1], index: 1, kind: input, shape index: {}]
  %s2 = inlined_call_operand.hbm [shape: f32[8,128], index: 2, kind: output, shape index: {}]
  %s3 = sld [smem:[#allocation0]]
  $region34: #{tpu_custom_call.1} parent=0
    _
  %s5 = ssub.s32 1, %s3
  %s6 = scalar_select 0, %s5, %s3
  $region1: #{tpu_custom_call.1} parent=0
    #allocation3 [shape = 'u8[4096]{0}', space=vmem, size = 0x1000, scoped, tag = 'input window, operand 0, single buffered']
    #allocation4 [shape = 's32[1]{0}', space=sflag, size = 0x4, scoped, tag = 'scoped memory for tpu_custom_call.1']
    #allocation5 [shape = 's32[1]{0}', space=sflag, size = 0x4, scoped, tag = 'scoped memory for tpu_custom_call.1']
    #allocation6 [shape = 'u8[4096]{0}', space=vmem, size = 0x1000, scoped, tag = 'input window, operand 1, single buffered']
    #allocation7 [shape = 's32[1]{0}', space=sflag, size = 0x4, scoped, tag = 'scoped memory for tpu_custom_call.1']
    #allocation8 [shape = 'u8[4096]{0}', space=vmem, size = 0x1000, scoped, tag = 'output window, operand 0, single buffered']
    %7 = vsyncpa [#allocation4], 0
    %8 = vsyncpa [#allocation7], 0
    %9 = vsyncpa [#allocation5], 0
    // Predicated region
    $region2: #{tpu_custom_call.1} parent=1 // pred_check
      _
    $region3: #{tpu_custom_call.1} parent=1 // pred_check_branch
      %11 = sbr.rel (0) target = $region5
    $region4: #{tpu_custom_call.1} parent=1 // pred_region
      %s12 = sadd.s32 0, 0
      %p13 = scmp.lt.s32.totalorder %s12, 0
      %s14 = scalar_select %p13, %s12, 0
      %s16 = ssub.s32 128, 128
      %17 = vsyncadd [#allocation4], %s16
      %s18 = smul.addr %s14, 128
      %s19 = scalar_lea.hbm %s0, %s18
      %s21 = sshll.u32 [#allocation3], 4
      %s22 = int_to_ptr.vmem [resolvable:$true] %s21
      %24 = dma.hbm_to_vmem [thread:$0]  %s19, 128, %s22, [#allocation4]
    $region5: #{tpu_custom_call.1} parent=1 // pred_fallthru
      _
    // Predicated region
    $region6: #{tpu_custom_call.1} parent=1 // pred_check
      _
    $region7: #{tpu_custom_call.1} parent=1 // pred_check_branch
      %26 = sbr.rel (0) target = $region9
    $region8: #{tpu_custom_call.1} parent=1 // pred_region
      %s27 = sadd.s32 0, 0
      %p28 = scmp.lt.s32.totalorder %s27, 0
      %s29 = scalar_select %p28, %s27, 0
      %s31 = ssub.s32 128, 128
      %32 = vsyncadd [#allocation7], %s31
      %s33 = smul.addr %s29, 128
      %s34 = scalar_lea.hbm %s1, %s33
      %s36 = sshll.u32 [#allocation6], 4
      %s37 = int_to_ptr.vmem [resolvable:$true] %s36
      %39 = dma.hbm_to_vmem [thread:$0]  %s34, 128, %s37, [#allocation7]
    $region9: #{tpu_custom_call.1} parent=1 // pred_fallthru
      _
    // Predicated region
    $region10: #{tpu_custom_call.1} parent=1 // pred_check
      _
    $region11: #{tpu_custom_call.1} parent=1 // pred_check_branch
      %41 = sbr.rel (0) target = $region13
    $region12: #{tpu_custom_call.1} parent=1 // pred_region
      %42 = dma.done [#allocation4], 128
    $region13: #{tpu_custom_call.1} parent=1 // pred_fallthru
      _
    // Predicated region
    $region14: #{tpu_custom_call.1} parent=1 // pred_check
      _
    $region15: #{tpu_custom_call.1} parent=1 // pred_check_branch
      %44 = sbr.rel (0) target = $region17
    $region16: #{tpu_custom_call.1} parent=1 // pred_region
      %45 = dma.done [#allocation7], 128
    $region17: #{tpu_custom_call.1} parent=1 // pred_fallthru
      _
    %s46 = sadd.s32 0, 0
    %p47 = scmp.lt.s32.totalorder %s46, 0
    %s48 = scalar_select %p47, %s46, 0
    %s49 = sadd.s32 0, 0
    %p50 = scmp.lt.s32.totalorder %s49, 0
    %s51 = scalar_select %p50, %s49, 0
    %p52 = scmp.eq.s32.totalorder 0, 0
    // Predicated region
    $region18: #{tpu_custom_call.1} parent=1 // pred_check
      %p53 = pneg %p52
    $region19: #{tpu_custom_call.1} parent=1 // pred_check_branch
      %55 = sbr.rel (%p53) target = $region21
    $region20: #{tpu_custom_call.1} parent=1 // pred_region
      %vm56 = vcmask 0
      %57 = vst.msk [vmem:[#allocation2] sm:$0x1] %vm56, 0.0
    $region21: #{tpu_custom_call.1} parent=1 // pred_fallthru
      _
    %v58 = vld [vmem:[#allocation3] sm:$0xff]
    %v59 = vld [vmem:[#allocation6] sm:$0xff]
    %vm60 = vcmask 261120
    %v61 = vsel %vm60, %v58, -inf
    %62 = vmax.xlane.f32.xlu0 %v61
    %v63 = vpop.xlane.xlu0 %62
    %v64 = vsub.f32 %v58, %v63
    %v65 = vmul.f32 %v64, 1.442695
    %v66 = vpow.pop %v65
    %v67 = vsel %vm60, %v66, 0.0
    %68 = vadd.xlane.f32.xlu0 %v67
    %v69 = vpop.xlane.xlu0 %68
    %v70 = vlog2.pop %v69
    %v71 = vmul.f32 %v70, 0.6931472
    %v72 = vadd.f32 %v63, %v71
    %v73 = vlaneseq
    %v74 = vand.u32 %v73, 127
    %75 = vset.pattern.permute.xlu0 0
    %76 = vperm.xlu0 %75, %v59
    %v77 = vpop.permute.xlu0 %76
    %vm78 = vcmp.eq.s32.totalorder %v74, %v77
    %v79 = vsel %vm78, %v58, 0.0
    %v80 = vsel %vm60, %v79, 0.0
    %81 = vadd.xlane.f32.xlu0 %v80
    %v82 = vpop.xlane.xlu0 %81
    %v83 = vsub.f32 %v72, %v82
    %v84 = vsub.f32 %v82, %v72
    %v85 = vmul.f32 %v84, 1.442695
    %v86 = vpow.pop %v85
    %v87 = vsub.f32 1.0, %v86
    %v88 = vmax.f32 %v87, 0.0
    %v89 = vmul.f32 %v88, %v88
    %v90 = vmul.f32 %v89, %v83
    %s91 = sadd.s32 0, 0
    %s92 = smul.u32 %s91, 8
    %v93 = vlaneseq
    %v94 = vshrl.u32 %v93, 7
    %v95 = vstv %s92
    %v96 = vadd.s32 %v94, %v95
    %vm97 = vcmp.lt.s32.totalorder %v96, 8
    %v98 = vsel %vm97, %v90, 0.0
    %v99 = vld [vmem:[#allocation2] sm:$0x1]
    %v100 = vrot.slane %v98, 4
    %v101 = vadd.f32 %v98, %v100
    %v102 = vrot.slane %v101, 2
    %v103 = vadd.f32 %v101, %v102
    %v104 = vrot.slane %v103, 1
    %v105 = vadd.f32 %v103, %v104
    %v106 = vadd.f32 %v99, %v105
    %vm107 = vcmask 0
    %108 = vst.msk [vmem:[#allocation2] sm:$0x1] %vm107, %v106
    // Predicated region
    $region22: #{tpu_custom_call.1} parent=1 // pred_check
      %p109 = pneg %p52
    $region23: #{tpu_custom_call.1} parent=1 // pred_check_branch
      %111 = sbr.rel (%p109) target = $region25
    $region24: #{tpu_custom_call.1} parent=1 // pred_region
      %v112 = vld [vmem:[#allocation2] sm:$0x1]
      %v114 = vlaneseq
      %v115 = vshrl.u32 %v114, 7
      %v116 = vsub.s32 0, %v115
      %v117 = vrot.slane %v112, %v116
      %118 = vset.pattern.permute.xlu0 0
      %119 = vperm.xlu0 %118, %v117
      %v120 = vpop.permute.xlu0 %119
      %v122 = vadd.f32 %v120, 0.0
      %123 = vst [vmem:[#allocation8] sm:$0xff] %v122
    $region25: #{tpu_custom_call.1} parent=1 // pred_fallthru
      _
    // Predicated region
    $region26: #{tpu_custom_call.1} parent=1 // pred_check
      _
    $region27: #{tpu_custom_call.1} parent=1 // pred_check_branch
      %125 = sbr.rel (0) target = $region29
    $region28: #{tpu_custom_call.1} parent=1 // pred_region
      %s127 = ssub.s32 128, 128
      %128 = vsyncadd [#allocation5], %s127
      %s130 = sshll.u32 [#allocation8], 4
      %s131 = int_to_ptr.vmem [resolvable:$true] %s130
      %133 = dma.vmem_to_hbm [thread:$0]  %s131, 128, %s2, [#allocation5]
    $region29: #{tpu_custom_call.1} parent=1 // pred_fallthru
      _
    // Predicated region
    $region30: #{tpu_custom_call.1} parent=1 // pred_check
      _
    $region31: #{tpu_custom_call.1} parent=1 // pred_check_branch
      %135 = sbr.rel (0) target = $region33
    $region32: #{tpu_custom_call.1} parent=1 // pred_region
      %136 = dma.done [#allocation5], 128
    $region33: #{tpu_custom_call.1} parent=1 // pred_fallthru
      _
    %137 = vsyncpa [#allocation4], 1
    %138 = vsyncpa [#allocation7], 1
    %139 = vsyncpa [#allocation5], 1

</llo_original>
